<compile_context>
chip_gen: v5e
topology: v5e:2x2
jax: 0.10.0
libtpu: 0.0.40
codegen_flags: <defaults>
</compile_context>

<pallas_src>
import jax
import jax.numpy as jnp
from jax.experimental import pallas as pl
from jax.experimental.pallas import tpu as pltpu

_LANE = 128
_SUBLANE = 8
_MAX_LANE_WIDTH = 4096            # lane-dense: up to 32 x 128 lanes per row
_TARGET_BLOCK_BYTES = 4 << 20     # ~4 MiB per block buffer


def _copy_kernel(x_ref, o_ref):
    # Pure pass-through of the selected tensor's tile.
    o_ref[...] = x_ref[...]


def _largest_lane_width(total):
    """Largest multiple of 128 that divides `total`, capped at _MAX_LANE_WIDTH."""
    if total % _LANE != 0:
        return None
    best = _LANE
    width = _LANE
    cap = min(total, _MAX_LANE_WIDTH)
    while width <= cap:
        if total % width == 0:
            best = width
        width += _LANE
    return best


def index_forward(xs, index=0):
    """Pallas equivalent of Index.forward: select xs[index] and materialize it."""
    x = xs[index]                      # Python-level (static) list selection.
    orig_shape = x.shape
    total = x.size
    itemsize = jnp.dtype(x.dtype).itemsize

    # Lane-dense 2D factorization: (R, L) with L a multiple of 128.
    L = _largest_lane_width(total)
    if L is None:
        # Size not a multiple of 128: single whole-array block (allowed because
        # block shape == full array dims).
        # TODO(synk): pad to a multiple of 128 lanes if such sizes ever get large.
        R, L = 1, total
    else:
        R = total // L

    x2d = x.reshape(R, L)

    # Pick block rows: ~4 MiB per block, multiple of 8 sublanes, else whole array.
    bytes_per_row = L * itemsize
    target_rows = max(1, _TARGET_BLOCK_BYTES // bytes_per_row)
    if R <= target_rows or R < 2 * _SUBLANE:
        block_rows = R                 # whole-array block, grid of 1
        grid = (1,)
    else:
        block_rows = max(_SUBLANE, (min(target_rows, R) // _SUBLANE) * _SUBLANE)
        grid = (pl.cdiv(R, block_rows),)

    out2d = pl.pallas_call(
        _copy_kernel,
        out_shape=jax.ShapeDtypeStruct((R, L), x.dtype),
        grid_spec=pltpu.PrefetchScalarGridSpec(
            num_scalar_prefetch=0,
            grid=grid,
            in_specs=[pl.BlockSpec((block_rows, L), lambda i: (i, 0))],
            out_specs=pl.BlockSpec((block_rows, L), lambda i: (i, 0)),
        ),
        compiler_params=pltpu.CompilerParams(
            dimension_semantics=("parallel",),
            vmem_limit_bytes=48 << 20,
        ),
    )(x2d)

    return out2d.reshape(orig_shape)


if __name__ == "__main__":
    key = jax.random.PRNGKey(0)
    k0, k1, k2, k3 = jax.random.split(key, 4)

    # --- Test 1: small NCHW feature maps (whole-array single-block path) ---
    shape = (2, 4, 16, 16)
    xs = [
        jax.random.normal(k0, shape, dtype=jnp.float32),
        jax.random.normal(k1, shape, dtype=jnp.float32),
        jax.random.normal(k2, shape, dtype=jnp.float32),
    ]
    index = 1
    out = jax.block_until_ready(index_forward(xs, index=index))
    assert out.shape == shape
    assert out.dtype == xs[index].dtype
    assert bool(jnp.array_equal(out, xs[index]))

    # --- Test 2: larger tensor to exercise the multi-step tiled path ---
    shape2 = (8, 16, 128, 128)  # 8 MiB f32 -> lane-dense (512, 4096), grid=(2,)
    y = jax.random.normal(k3, shape2, dtype=jnp.float32)
    out2 = jax.block_until_ready(index_forward([y], index=0))
    assert out2.shape == shape2
    assert bool(jnp.array_equal(out2, y))

    print("KERNEL_OK")
</pallas_src>

<mosaic_0001>
module attributes {stable_mosaic.version = 11 : i64} {
  func.func @_copy_kernel(%arg0: i32, %arg1: memref<1x2048xf32, #tpu.memory_space<vmem>>, %arg2: memref<1x2048xf32, #tpu.memory_space<vmem>>) attributes {dimension_semantics = [#tpu.dimension_semantics<parallel>], iteration_bounds = array<i64: 1>, scalar_prefetch = 0 : i64, scratch_operands = 0 : i64, tpu.core_type = #tpu.core_type<tc>, window_params = [{transform_indices = @transform_0, window_bounds = array<i64: 1, 2048>}, {transform_indices = @transform_1, window_bounds = array<i64: 1, 2048>}]} {
    %c0 = arith.constant 0 : index
    %c0_0 = arith.constant 0 : index
    %0 = vector.load %arg1[%c0, %c0_0] : memref<1x2048xf32, #tpu.memory_space<vmem>>, vector<1x2048xf32>
    %c0_1 = arith.constant 0 : index
    %c0_2 = arith.constant 0 : index
    %1 = vector.load %arg2[%c0_1, %c0_2] : memref<1x2048xf32, #tpu.memory_space<vmem>>, vector<1x2048xf32>
    tpu.vector_store %arg2[%c0_1, %c0_2], %0 {strides = array<i32>} : memref<1x2048xf32, #tpu.memory_space<vmem>>, vector<1x2048xf32>,
    return
  }
  func.func @transform_0(%arg0: i32) -> (i32, i32) {
    %c0_i32 = arith.constant 0 : i32
    %c0_i32_0 = arith.constant 0 : i32
    return %arg0, %c0_i32 : i32, i32
  }
  func.func @transform_1(%arg0: i32) -> (i32, i32) {
    %c0_i32 = arith.constant 0 : i32
    %c0_i32_0 = arith.constant 0 : i32
    return %arg0, %c0_i32 : i32, i32
  }
}

</mosaic_0001>

<llo_original>
// kernel: tpu_custom_call.1
$region0: #{tpu_custom_call.1}
  #allocation0 [shape = 'u32[]', space=smem, size = 0x4, offset = 0x4, fixed_abs, tag = 'smem constant byte address 0x4 - core index']
  #allocation1 [shape = 'u32[72,128]{1,0:T(1,128)}', space=vmem, size = 0x9000, scoped, tag = 'internal scratch']
  %s0 = inlined_call_operand.hbm [shape: f32[1,2048], index: 0, kind: input, shape index: {}]
  %s1 = inlined_call_operand.hbm [shape: f32[1,2048], index: 1, kind: output, shape index: {}]
  %s2 = sld [smem:[#allocation0]]
  $region18: #{tpu_custom_call.1} parent=0
    _
  %s4 = ssub.s32 1, %s2
  %s5 = scalar_select 0, %s4, %s2
  $region1: #{tpu_custom_call.1} parent=0
    #allocation2 [shape = 'u8[8192]{0}', space=vmem, size = 0x2000, scoped, tag = 'input window, operand 0, single buffered']
    #allocation3 [shape = 's32[1]{0}', space=sflag, size = 0x4, scoped, tag = 'scoped memory for tpu_custom_call.1']
    #allocation4 [shape = 's32[1]{0}', space=sflag, size = 0x4, scoped, tag = 'scoped memory for tpu_custom_call.1']
    #allocation5 [shape = 'u8[8192]{0}', space=vmem, size = 0x2000, scoped, tag = 'output window, operand 0, single buffered']
    %6 = vsyncpa [#allocation3], 0
    %7 = vsyncpa [#allocation4], 0
    // Predicated region
    $region2: #{tpu_custom_call.1} parent=1 // pred_check
      _
    $region3: #{tpu_custom_call.1} parent=1 // pred_check_branch
      %9 = sbr.rel (0) target = $region5
    $region4: #{tpu_custom_call.1} parent=1 // pred_region
      %11 = vsyncadd [#allocation3], 0
      %s13 = sshll.u32 %s0, 4
      %s14 = int_to_ptr.hbm [resolvable:$true] %s13
      %s15 = sshll.u32 [#allocation2], 4
      %s16 = int_to_ptr.vmem [resolvable:$true] %s15
      %18 = dma.hbm_to_vmem [thread:$0]  %s14, 256, %s16, [#allocation3]
    $region5: #{tpu_custom_call.1} parent=1 // pred_fallthru
      _
    // Predicated region
    $region6: #{tpu_custom_call.1} parent=1 // pred_check
      _
    $region7: #{tpu_custom_call.1} parent=1 // pred_check_branch
      %20 = sbr.rel (0) target = $region9
    $region8: #{tpu_custom_call.1} parent=1 // pred_region
      %22 = dma.done [#allocation3], 256
    $region9: #{tpu_custom_call.1} parent=1 // pred_fallthru
      _
    %v23 = vld [vmem:[#allocation2] sm:$0xff]
    %v24 = vld [vmem:[#allocation2 + $0x8] sm:$0xff]
    %25 = vst [vmem:[#allocation5] sm:$0xff] %v23
    %26 = vst [vmem:[#allocation5 + $0x8] sm:$0xff] %v24
    // Predicated region
    $region10: #{tpu_custom_call.1} parent=1 // pred_check
      _
    $region11: #{tpu_custom_call.1} parent=1 // pred_check_branch
      %28 = sbr.rel (0) target = $region13
    $region12: #{tpu_custom_call.1} parent=1 // pred_region
      %30 = vsyncadd [#allocation4], 0
      %s32 = sshll.u32 [#allocation5], 4
      %s33 = int_to_ptr.vmem [resolvable:$true] %s32
      %s34 = sshll.u32 %s1, 4
      %s35 = int_to_ptr.hbm [resolvable:$true] %s34
      %37 = dma.vmem_to_hbm [thread:$0]  %s33, 256, %s35, [#allocation4]
    $region13: #{tpu_custom_call.1} parent=1 // pred_fallthru
      _
    // Predicated region
    $region14: #{tpu_custom_call.1} parent=1 // pred_check
      _
    $region15: #{tpu_custom_call.1} parent=1 // pred_check_branch
      %39 = sbr.rel (0) target = $region17
    $region16: #{tpu_custom_call.1} parent=1 // pred_region
      %41 = dma.done [#allocation4], 256
    $region17: #{tpu_custom_call.1} parent=1 // pred_fallthru
      _
    %42 = vsyncpa [#allocation3], 1
    %43 = vsyncpa [#allocation4], 1

</llo_original>
